<compile_context>
chip_gen: v5e
topology: v5e:2x2
jax: 0.10.0
libtpu: 0.0.40
codegen_flags: <defaults>
</compile_context>

<pallas_src>
import math
from functools import partial

import jax
import jax.numpy as jnp
from jax.experimental import pallas as pl
from jax.experimental.pallas import tpu as pltpu


def _round_up(v, m):
    return ((v + m - 1) // m) * m


def _vmem_capacity_bytes():
    try:
        return int(pltpu.get_tpu_info().vmem_capacity_bytes)
    except Exception:
        return 64 * 1024 * 1024  # conservative fallback: v7x per-TensorCore VMEM


def _pick_nblk(N, per_img_bytes, budget_bytes):
    """Images per grid step: as large as the VMEM budget allows while keeping
    >= 4 grid steps (>= 2 per v7x TensorCore, and enough steps for BlockSpec
    double-buffer pipelining on single-TC v5e/v6e)."""
    if N <= 1:
        return 1
    min_steps = 4 if N >= 4 else N
    cap = max(1, budget_bytes // max(per_img_bytes, 1))
    return max(1, min(cap, N // min_steps))


def _make_conv_kernel(K, stride, Nblk, Hout, WCin, WCout):
    def conv_kernel(x_ref, w_ref, b_ref, o_ref):
        # x_ref: (Nblk, Hp, Wp*Cin)        bf16 packed input
        # w_ref: (K, Wp*Cin, Wout*Cout)    bf16 row-Toeplitz weights
        # b_ref: (1, Wout*Cout)            f32 bias tiled over Wout
        # o_ref: (Nblk, Hout, Wout*Cout)   lane-dense output block
        def tap(kh):
            sl = pl.ds(kh, Hout) if stride == 1 else pl.ds(kh, Hout, stride=stride)
            return x_ref[:, sl, :].reshape(Nblk * Hout, WCin)  # bf16 ref-slice

        acc = jnp.dot(tap(0), w_ref[0], preferred_element_type=jnp.float32)
        for kh in range(1, K):
            acc = acc + jnp.dot(tap(kh), w_ref[kh],
                                preferred_element_type=jnp.float32)
        out = acc + b_ref[...]                                  # bias epilogue
        o_ref[...] = out.reshape(Nblk, Hout, WCout).astype(o_ref.dtype)
        # TODO(synk): fusing the K taps into one (Nblk*Hout, K*WCin)x(K*WCin, WCout)
        # matmul needs an unaligned lane concat (WCin=72); at these tiny channel
        # counts the kernel is HBM-bound, so the K register-accumulated dots are kept.

    return conv_kernel


@partial(jax.jit, static_argnames=("stride", "padding"))
def synapse_conv_bptt_forward(spike, weight_oihw, bias, *, stride=1, padding=1):
    """spike: (T, B, Cin, H, W); weight: (Cout, Cin, K, K); bias: (Cout,)."""
    T, B, Cin, H, W = spike.shape
    Cout, _, K, _ = weight_oihw.shape
    Hout = (H + 2 * padding - K) // stride + 1
    Wout = (W + 2 * padding - K) // stride + 1
    Hp, Wp = H + 2 * padding, W + 2 * padding
    WCin, WCout = Wp * Cin, Wout * Cout
    N = T * B
    out_dtype = spike.dtype
    out_isz = jnp.dtype(out_dtype).itemsize

    # ---- generation-aware block sizing ---------------------------------------
    in_img = _round_up(Hp, 16) * _round_up(WCin, 128) * 2            # bf16 input
    out_img = _round_up(Hout, 32 // out_isz) * _round_up(WCout, 128) * out_isz
    tmp_img = Hout * (_round_up(WCin, 128) * 2 + _round_up(WCout, 128) * 4)
    per_img = 2 * in_img + 2 * out_img + tmp_img                     # 2x = dbl-buffer
    vmem_cap = _vmem_capacity_bytes()
    budget = min(24 << 20, vmem_cap // 3)   # leave room for weights + internals
    Nblk = _pick_nblk(N, per_img, budget)
    grid_n = -(-N // Nblk)
    Npad = grid_n * Nblk

    w_bytes = K * _round_up(WCin, 16) * _round_up(WCout, 128) * 2    # bf16 weights
    b_bytes = 8 * _round_up(WCout, 128) * 4
    vmem_need = Nblk * per_img + 2 * (w_bytes + b_bytes)
    vmem_limit = int(min(vmem_cap * 9 // 10, max(32 << 20, 2 * vmem_need)))
    vmem_limit = max(vmem_limit, vmem_need + (4 << 20))

    # ---- glue: pack input to (Npad, Hp, Wp*Cin) in bf16 ----------------------
    # spikes are {0,1}: exact in bf16, halves the bytes moved by the layout pass.
    x = spike.astype(jnp.bfloat16).reshape(N, Cin, H, W).transpose(0, 2, 3, 1)
    x = jnp.pad(x, ((0, Npad - N), (padding, padding), (padding, padding), (0, 0)))
    x = x.reshape(Npad, Hp, WCin)
    # TODO(synk): the NCHW<->packed layout passes remain XLA glue; they vanish
    # only if the surrounding SNN layers adopt the packed (N, H, W*C) layout.

    # ---- glue: row-Toeplitz weights (K, Wp*Cin, Wout*Cout) bf16 + f32 bias ---
    # NOTE: this formulation only pays when K*Cin is small and Wout*Cout lands
    # near a 128 multiple; for large channels/widths use a Cin-lane im2col.
    w_hwio = weight_oihw.transpose(2, 3, 1, 0).astype(jnp.float32)   # [kh, kw, ci, co]
    kw_i = jnp.arange(K)[:, None, None]
    wi_i = jnp.arange(Wp)[None, :, None]
    wo_i = jnp.arange(Wout)[None, None, :]
    onehot = (wi_i == wo_i * stride + kw_i).astype(jnp.float32)      # (K, Wp, Wout)
    bigw = jnp.einsum("qiw,hqcd->hicwd", onehot, w_hwio)             # (K,Wp,Cin,Wout,Cout)
    bigw = bigw.reshape(K, WCin, WCout).astype(jnp.bfloat16)         # bf16 MXU operand
    b_row = jnp.tile(bias.astype(jnp.float32), Wout).reshape(1, WCout)

    kernel = _make_conv_kernel(K, stride, Nblk, Hout, WCin, WCout)

    cost = pl.CostEstimate(
        flops=int(2 * Npad * Hout * K * WCin * WCout),
        transcendentals=0,
        bytes_accessed=int(x.size * 2 + bigw.size * 2 + b_row.size * 4
                           + Npad * Hout * WCout * out_isz),
    )

    out_packed = pl.pallas_call(
        kernel,
        out_shape=jax.ShapeDtypeStruct((Npad, Hout, WCout), out_dtype),
        grid_spec=pltpu.PrefetchScalarGridSpec(
            num_scalar_prefetch=0,
            grid=(grid_n,),
            in_specs=[
                pl.BlockSpec((Nblk, Hp, WCin), lambda g: (g, 0, 0)),
                pl.BlockSpec((K, WCin, WCout), lambda g: (0, 0, 0)),
                pl.BlockSpec((1, WCout), lambda g: (0, 0)),
            ],
            out_specs=pl.BlockSpec((Nblk, Hout, WCout), lambda g: (g, 0, 0)),
        ),
        compiler_params=pltpu.CompilerParams(
            dimension_semantics=("parallel",),
            vmem_limit_bytes=vmem_limit,
        ),
        cost_estimate=cost,
    )(x, bigw, b_row)

    # ---- glue: back to the PyTorch (T, B, Cout, Hout, Wout) layout -----------
    out = (
        out_packed[:N]
        .reshape(N, Hout, Wout, Cout)
        .transpose(0, 3, 1, 2)
        .reshape(T, B, Cout, Hout, Wout)
    )
    return out


if __name__ == "__main__":
    # small shapes consistent with the module defaults
    TIME, BATCH = 8, 2
    IN_CH, OUT_CH = 4, 8
    H = W = 16
    KSIZE, STRIDE, PAD = 3, 1, 1

    key = jax.random.PRNGKey(0)
    k_spike, k_w = jax.random.split(key)

    # binary spikes (values in {0,1}) like an SNN input
    spike = (jax.random.uniform(k_spike, (TIME, BATCH, IN_CH, H, W)) > 0.7).astype(
        jnp.float32
    )

    # kaiming_normal_(mode='fan_out', nonlinearity='relu'), bias = 0
    fan_out = OUT_CH * KSIZE * KSIZE
    std = math.sqrt(2.0 / fan_out)
    weight = jax.random.normal(k_w, (OUT_CH, IN_CH, KSIZE, KSIZE), jnp.float32) * std
    bias = jnp.zeros((OUT_CH,), jnp.float32)

    out = synapse_conv_bptt_forward(spike, weight, bias, stride=STRIDE, padding=PAD)
    out = jax.block_until_ready(out)

    # Reference: F.conv2d semantics.  Weights are rounded to bf16 to match the
    # kernel's MXU operand precision (spikes are exact in bf16, accumulation is
    # f32 in both paths), so only summation-order noise remains.
    weight_q = weight.astype(jnp.bfloat16).astype(jnp.float32)
    x_flat = spike.reshape(TIME * BATCH, IN_CH, H, W)
    ref = jax.lax.conv_general_dilated(
        x_flat,
        weight_q,
        window_strides=(STRIDE, STRIDE),
        padding=((PAD, PAD), (PAD, PAD)),
        dimension_numbers=("NCHW", "OIHW", "NCHW"),
        precision=jax.lax.Precision.HIGHEST,
    ) + bias.reshape(1, OUT_CH, 1, 1)
    ref = ref.reshape(TIME, BATCH, OUT_CH, ref.shape[-2], ref.shape[-1])

    assert out.shape == (TIME, BATCH, OUT_CH, H, W), out.shape
    max_err = float(jnp.max(jnp.abs(out - ref)))
    assert max_err < 2e-3, max_err
    print("KERNEL_OK")
</pallas_src>

<mosaic_0001>
module attributes {stable_mosaic.version = 11 : i64} {
  func.func @conv_kernel(%arg0: i32, %arg1: memref<4x18x72xbf16, #tpu.memory_space<vmem>>, %arg2: memref<3x72x128xbf16, #tpu.memory_space<vmem>>, %arg3: memref<1x128xf32, #tpu.memory_space<vmem>>, %arg4: memref<4x16x128xf32, #tpu.memory_space<vmem>>) attributes {dimension_semantics = [#tpu.dimension_semantics<parallel>], iteration_bounds = array<i64: 4>, scalar_prefetch = 0 : i64, scratch_operands = 0 : i64, tpu.core_type = #tpu.core_type<tc>, window_params = [{transform_indices = @transform_0, window_bounds = array<i64: 4, 18, 72>}, {pipeline_mode = #tpu.pipeline_mode<synchronous>, transform_indices = @transform_1, window_bounds = array<i64: 3, 72, 128>}, {pipeline_mode = #tpu.pipeline_mode<synchronous>, transform_indices = @transform_2, window_bounds = array<i64: 1, 128>}, {transform_indices = @transform_3, window_bounds = array<i64: 4, 16, 128>}]} {
    %c0 = arith.constant 0 : index
    %c0_0 = arith.constant 0 : index
    %c0_1 = arith.constant 0 : index
    %0 = vector.load %arg1[%c0, %c0_0, %c0_1] : memref<4x18x72xbf16, #tpu.memory_space<vmem>>, vector<4x16x72xbf16>
    %1 = vector.shape_cast %0 : vector<4x16x72xbf16> to vector<64x72xbf16>
    %c0_2 = arith.constant 0 : index
    %c0_3 = arith.constant 0 : index
    %c0_4 = arith.constant 0 : index
    %2 = vector.load %arg2[%c0_2, %c0_3, %c0_4] : memref<3x72x128xbf16, #tpu.memory_space<vmem>>, vector<1x72x128xbf16>
    %3 = vector.shape_cast %2 : vector<1x72x128xbf16> to vector<72x128xbf16>
    %cst = arith.constant dense<0.000000e+00> : vector<64x128xf32>
    %4 = tpu.matmul %1, %3, %cst {dimension_numbers = #tpu.dot_dimension_numbers<[1], [0], [0], [1], [0, 0, 1, 1], [], []>} : vector<64x72xbf16>, vector<72x128xbf16>, vector<64x128xf32> -> vector<64x128xf32>
    %c0_5 = arith.constant 0 : index
    %c1 = arith.constant 1 : index
    %c0_6 = arith.constant 0 : index
    %5 = vector.load %arg1[%c0_5, %c1, %c0_6] : memref<4x18x72xbf16, #tpu.memory_space<vmem>>, vector<4x16x72xbf16>
    %6 = vector.shape_cast %5 : vector<4x16x72xbf16> to vector<64x72xbf16>
    %c1_7 = arith.constant 1 : index
    %c0_8 = arith.constant 0 : index
    %c0_9 = arith.constant 0 : index
    %7 = vector.load %arg2[%c1_7, %c0_8, %c0_9] : memref<3x72x128xbf16, #tpu.memory_space<vmem>>, vector<1x72x128xbf16>
    %8 = vector.shape_cast %7 : vector<1x72x128xbf16> to vector<72x128xbf16>
    %cst_10 = arith.constant dense<0.000000e+00> : vector<64x128xf32>
    %9 = tpu.matmul %6, %8, %cst_10 {dimension_numbers = #tpu.dot_dimension_numbers<[1], [0], [0], [1], [0, 0, 1, 1], [], []>} : vector<64x72xbf16>, vector<72x128xbf16>, vector<64x128xf32> -> vector<64x128xf32>
    %10 = arith.addf %4, %9 : vector<64x128xf32>
    %c0_11 = arith.constant 0 : index
    %c2 = arith.constant 2 : index
    %c0_12 = arith.constant 0 : index
    %11 = vector.load %arg1[%c0_11, %c2, %c0_12] : memref<4x18x72xbf16, #tpu.memory_space<vmem>>, vector<4x16x72xbf16>
    %12 = vector.shape_cast %11 : vector<4x16x72xbf16> to vector<64x72xbf16>
    %c2_13 = arith.constant 2 : index
    %c0_14 = arith.constant 0 : index
    %c0_15 = arith.constant 0 : index
    %13 = vector.load %arg2[%c2_13, %c0_14, %c0_15] : memref<3x72x128xbf16, #tpu.memory_space<vmem>>, vector<1x72x128xbf16>
    %14 = vector.shape_cast %13 : vector<1x72x128xbf16> to vector<72x128xbf16>
    %cst_16 = arith.constant dense<0.000000e+00> : vector<64x128xf32>
    %15 = tpu.matmul %12, %14, %cst_16 {dimension_numbers = #tpu.dot_dimension_numbers<[1], [0], [0], [1], [0, 0, 1, 1], [], []>} : vector<64x72xbf16>, vector<72x128xbf16>, vector<64x128xf32> -> vector<64x128xf32>
    %16 = arith.addf %10, %15 : vector<64x128xf32>
    %c0_17 = arith.constant 0 : index
    %c0_18 = arith.constant 0 : index
    %17 = vector.load %arg3[%c0_17, %c0_18] : memref<1x128xf32, #tpu.memory_space<vmem>>, vector<1x128xf32>
    %18 = vector.broadcast %17 : vector<1x128xf32> to vector<64x128xf32>
    %19 = arith.addf %16, %18 : vector<64x128xf32>
    %20 = vector.shape_cast %19 : vector<64x128xf32> to vector<4x16x128xf32>
    %c0_19 = arith.constant 0 : index
    %c0_20 = arith.constant 0 : index
    %c0_21 = arith.constant 0 : index
    %21 = vector.load %arg4[%c0_19, %c0_20, %c0_21] : memref<4x16x128xf32, #tpu.memory_space<vmem>>, vector<4x16x128xf32>
    tpu.vector_store %arg4[%c0_19, %c0_20, %c0_21], %20 {strides = array<i32>} : memref<4x16x128xf32, #tpu.memory_space<vmem>>, vector<4x16x128xf32>,
    return
  }
  func.func @transform_0(%arg0: i32) -> (i32, i32, i32) {
    %c0_i32 = arith.constant 0 : i32
    %c0_i32_0 = arith.constant 0 : i32
    %c0_i32_1 = arith.constant 0 : i32
    return %arg0, %c0_i32, %c0_i32_0 : i32, i32, i32
  }
  func.func @transform_1(%arg0: i32) -> (i32, i32, i32) {
    %c0_i32 = arith.constant 0 : i32
    %c0_i32_0 = arith.constant 0 : i32
    %c0_i32_1 = arith.constant 0 : i32
    %c0_i32_2 = arith.constant 0 : i32
    return %c0_i32, %c0_i32_0, %c0_i32_1 : i32, i32, i32
  }
  func.func @transform_2(%arg0: i32) -> (i32, i32) {
    %c0_i32 = arith.constant 0 : i32
    %c0_i32_0 = arith.constant 0 : i32
    %c0_i32_1 = arith.constant 0 : i32
    return %c0_i32, %c0_i32_0 : i32, i32
  }
  func.func @transform_3(%arg0: i32) -> (i32, i32, i32) {
    %c0_i32 = arith.constant 0 : i32
    %c0_i32_0 = arith.constant 0 : i32
    %c0_i32_1 = arith.constant 0 : i32
    return %arg0, %c0_i32, %c0_i32_0 : i32, i32, i32
  }
}

</mosaic_0001>

<llo_original>
// kernel: tile.8
$region0: #{tile.8}
  #allocation0 [shape = 's32[1]{0}', space=sflag, size = 0x4, scoped, tag = 'scoped memory for tile.8']
  %s0 = inlined_call_operand.vmem [shape: f32[8], index: 0, kind: input, shape index: {}]
  %s1 = inlined_call_operand.vmem [shape: f32[16,8], index: 1, kind: output, shape index: {}]
  // Predicated region
  $region2: #{tile.8} parent=0 // pred_check
    _
  $region3: #{tile.8} parent=0 // pred_check_branch
    %3 = sbr.rel (0) target = $region5
  $region4: #{tile.8} parent=0 // pred_region
    _
  $region5: #{tile.8} parent=0 // pred_fallthru
    _
  %v4 = vld [vmem:[%s0] ss:$0 sm:$0xff]
  %5 = vst [vmem:[%s1] sm:$0xff] %v4
  %s6 = scalar_lea.vmem %s1, 8
  %7 = vst [vmem:[%s6] sm:$0xff] %v4

// kernel: tile.9
$region0: #{tile.9}
  %s0 = inlined_call_operand.vmem [shape: f32[16,8], index: 0, kind: input, shape index: {}]
  %s1 = inlined_call_operand.vmem [shape: f32[1,128], index: 1, kind: output, shape index: {}]
  $region1: #{tile.9} parent=0
    #allocation0 [shape = 'u8[4096]{0}', space=vmem, size = 0x1000, scoped, tag = 'scoped mem for output reshape']
    %v2 = vld [vmem:[%s0] sm:$0x1]
    %vm3 = vcmask 64512
    %4 = vst.msk [vmem:[#allocation0] sm:$0x1] %vm3, %v2
    %s5 = scalar_lea.vmem %s0, 15
    %v6 = vld [vmem:[%s5] sm:$0x1]
    %7 = vrot.lane.b32.xlu0 %v6, 120
    %v8 = vpop.permute.xlu0 %7
    %vm9 = vcmask 1048512
    %10 = vst.msk [vmem:[#allocation0] sm:$0x1] %vm9, %v8
    %s11 = scalar_lea.vmem %s0, 14
    %v12 = vld [vmem:[%s11] sm:$0x1]
    %13 = vrot.lane.b32.xlu0 %v12, 112
    %v14 = vpop.permute.xlu0 %13
    %vm15 = vcmask 982912
    %16 = vst.msk [vmem:[#allocation0] sm:$0x1] %vm15, %v14
    %s17 = scalar_lea.vmem %s0, 13
    %v18 = vld [vmem:[%s17] sm:$0x1]
    %19 = vrot.lane.b32.xlu0 %v18, 104
    %v20 = vpop.permute.xlu0 %19
    %vm21 = vcmask 917312
    %22 = vst.msk [vmem:[#allocation0] sm:$0x1] %vm21, %v20
    %s23 = scalar_lea.vmem %s0, 12
    %v24 = vld [vmem:[%s23] sm:$0x1]
    %25 = vrot.lane.b32.xlu0 %v24, 96
    %v26 = vpop.permute.xlu0 %25
    %vm27 = vcmask 851712
    %28 = vst.msk [vmem:[#allocation0] sm:$0x1] %vm27, %v26
    %s29 = scalar_lea.vmem %s0, 11
    %v30 = vld [vmem:[%s29] sm:$0x1]
    %31 = vrot.lane.b32.xlu0 %v30, 88
    %v32 = vpop.permute.xlu0 %31
    %vm33 = vcmask 786112
    %34 = vst.msk [vmem:[#allocation0] sm:$0x1] %vm33, %v32
    %s35 = scalar_lea.vmem %s0, 10
    %v36 = vld [vmem:[%s35] sm:$0x1]
    %37 = vrot.lane.b32.xlu0 %v36, 80
    %v38 = vpop.permute.xlu0 %37
    %vm39 = vcmask 720512
    %40 = vst.msk [vmem:[#allocation0] sm:$0x1] %vm39, %v38
    %s41 = scalar_lea.vmem %s0, 9
    %v42 = vld [vmem:[%s41] sm:$0x1]
    %43 = vrot.lane.b32.xlu0 %v42, 72
    %v44 = vpop.permute.xlu0 %43
    %vm45 = vcmask 654912
    %46 = vst.msk [vmem:[#allocation0] sm:$0x1] %vm45, %v44
    %s47 = scalar_lea.vmem %s0, 8
    %v48 = vld [vmem:[%s47] sm:$0x1]
    %49 = vrot.lane.b32.xlu0 %v48, 64
    %v50 = vpop.permute.xlu0 %49
    %vm51 = vcmask 589312
    %52 = vst.msk [vmem:[#allocation0] sm:$0x1] %vm51, %v50
    %s53 = scalar_lea.vmem %s0, 7
    %v54 = vld [vmem:[%s53] sm:$0x1]
    %55 = vrot.lane.b32.xlu0 %v54, 56
    %v56 = vpop.permute.xlu0 %55
    %vm57 = vcmask 523712
    %58 = vst.msk [vmem:[#allocation0] sm:$0x1] %vm57, %v56
    %s59 = scalar_lea.vmem %s0, 6
    %v60 = vld [vmem:[%s59] sm:$0x1]
    %61 = vrot.lane.b32.xlu0 %v60, 48
    %v62 = vpop.permute.xlu0 %61
    %vm63 = vcmask 458112
    %64 = vst.msk [vmem:[#allocation0] sm:$0x1] %vm63, %v62
    %s65 = scalar_lea.vmem %s0, 5
    %v66 = vld [vmem:[%s65] sm:$0x1]
    %67 = vrot.lane.b32.xlu0 %v66, 40
    %v68 = vpop.permute.xlu0 %67
    %vm69 = vcmask 392512
    %70 = vst.msk [vmem:[#allocation0] sm:$0x1] %vm69, %v68
    %s71 = scalar_lea.vmem %s0, 4
    %v72 = vld [vmem:[%s71] sm:$0x1]
    %73 = vrot.lane.b32.xlu0 %v72, 32
    %v74 = vpop.permute.xlu0 %73
    %vm75 = vcmask 326912
    %76 = vst.msk [vmem:[#allocation0] sm:$0x1] %vm75, %v74
    %s77 = scalar_lea.vmem %s0, 3
    %v78 = vld [vmem:[%s77] sm:$0x1]
    %79 = vrot.lane.b32.xlu0 %v78, 24
    %v80 = vpop.permute.xlu0 %79
    %vm81 = vcmask 261312
    %82 = vst.msk [vmem:[#allocation0] sm:$0x1] %vm81, %v80
    %s83 = scalar_lea.vmem %s0, 2
    %v84 = vld [vmem:[%s83] sm:$0x1]
    %85 = vrot.lane.b32.xlu0 %v84, 16
    %v86 = vpop.permute.xlu0 %85
    %vm87 = vcmask 195712
    %88 = vst.msk [vmem:[#allocation0] sm:$0x1] %vm87, %v86
    %s89 = scalar_lea.vmem %s0, 1
    %v90 = vld [vmem:[%s89] sm:$0x1]
    %91 = vrot.lane.b32.xlu0 %v90, 8
    %v92 = vpop.permute.xlu0 %91
    %vm93 = vcmask 130112
    %94 = vst.msk [vmem:[#allocation0] sm:$0x1] %vm93, %v92
    %s96 = ssub.s32 2, 1
    %v97 = vld [vmem:[#allocation0] sm:%s96]
    %s99 = ssub.s32 2, 1
    %100 = vst [vmem:[%s1] sm:%s99] %v97

// kernel: synapse_conv_bptt_forward.1
$region0: #{synapse_conv_bptt_forward.1}
  #allocation0 [shape = 'u32[]', space=smem, size = 0x4, offset = 0x4, fixed_abs, tag = 'smem constant byte address 0x4 - core index']
  #allocation1 [shape = 'u32[72,128]{1,0:T(1,128)}', space=vmem, size = 0x9000, scoped, tag = 'internal scratch']
  %s0 = inlined_call_operand.vmem [shape: bf16[16,18,72], index: 0, kind: input, shape index: {}]
  %s1 = inlined_call_operand.vmem [shape: bf16[3,72,128], index: 1, kind: input, shape index: {}]
  %s2 = inlined_call_operand.vmem [shape: f32[1,128], index: 2, kind: input, shape index: {}]
  %s3 = inlined_call_operand.vmem [shape: f32[16,16,128], index: 3, kind: output, shape index: {}]
  %s4 = sld [smem:[#allocation0]]
  $region45: #{synapse_conv_bptt_forward.1} parent=0
    _
  %s6 = ssub.s32 1, %s4
  %s7 = scalar_select 0, %s6, %s4
  loop: start=0, step=1, limit=6
  $region2: #{synapse_conv_bptt_forward.1} parent=0 // loop_pre_header
    _
  $region3: #{synapse_conv_bptt_forward.1} parent=0 // loop_header
    %s9 = sphi 0, %s13
    %p10 = scmp.ge.s32.totalorder %s9, 6
    %s19 = sphi 0, %s21
    %s22 = sphi 0, %s19
    %s23 = sphi 0, %s22
    %s39 = sphi 0, %s23
    %s43 = sphi 0, %s43
    %s45 = sphi 0, %s43
    %s46 = sphi 0, %s45
    %s60 = sphi 0, %s46
    %s64 = sphi 0, %s64
    %s66 = sphi 0, %s64
    %s67 = sphi 0, %s66
    %s81 = sphi 0, %s67
    %s87 = sphi 0, %s89
    %s90 = sphi 0, %s87
    %s91 = sphi 0, %s90
    %s107 = sphi 0, %s91
  $region4: #{synapse_conv_bptt_forward.1} parent=0 // loop_header_branch
    %12 = sbr.rel (%p10) target = $region8
  $region5: #{synapse_conv_bptt_forward.1} parent=0 // loop_body
    %s14 = ssub.s32 %s9, 1
    %s15 = ssub.s32 %s9, 2
    %s16 = sadd.s32 %s9, 1
    %s17 = ssub.s32 %s9, %s16
    %p18 = scmp.eq.s32.totalorder %s17, 0
    %s20 = sadd.s32 %s19, 1
    %s21 = scalar_select %p18, %s19, %s20
    %p24 = pneg %p18
    %p25 = scmp.eq.s32.totalorder %s9, 3
    %p26 = por %p24, %p25
    %p27 = scmp.ne.s32.totalorder %s19, %s22
    %p28 = scmp.eq.s32.totalorder %s9, 0
    %p29 = por %p27, %p28
    %p30 = scmp.ne.s32.totalorder %s19, %s22
    %p31 = scmp.eq.s32.totalorder %s14, 3
    %p32 = por %p30, %p31
    %p33 = scmp.ne.s32.totalorder %s22, %s23
    %p34 = scmp.eq.s32.totalorder %s14, 0
    %p35 = por %p33, %p34
    %p36 = scmp.ne.s32.totalorder %s22, %s23
    %p37 = scmp.eq.s32.totalorder %s15, 3
    %p38 = por %p36, %p37
    %p40 = scmp.ne.s32.totalorder %s23, %s39
    %p41 = scmp.eq.s32.totalorder %s15, 0
    %p42 = por %p40, %p41
    %s44 = sadd.s32 %s43, 1
    %p47 = scmp.eq.s32.totalorder %s9, 3
    %p48 = scmp.ne.s32.totalorder %s43, %s45
    %p49 = scmp.eq.s32.totalorder %s9, 0
    %p50 = por %p48, %p49
    %p51 = scmp.ne.s32.totalorder %s43, %s45
    %p52 = scmp.eq.s32.totalorder %s14, 3
    %p53 = por %p51, %p52
    %p54 = scmp.ne.s32.totalorder %s45, %s46
    %p55 = scmp.eq.s32.totalorder %s14, 0
    %p56 = por %p54, %p55
    %p57 = scmp.ne.s32.totalorder %s45, %s46
    %p58 = scmp.eq.s32.totalorder %s15, 3
    %p59 = por %p57, %p58
    %p61 = scmp.ne.s32.totalorder %s46, %s60
    %p62 = scmp.eq.s32.totalorder %s15, 0
    %p63 = por %p61, %p62
    %s65 = sadd.s32 %s64, 1
    %p68 = scmp.eq.s32.totalorder %s9, 3
    %p69 = scmp.ne.s32.totalorder %s64, %s66
    %p70 = scmp.eq.s32.totalorder %s9, 0
    %p71 = por %p69, %p70
    %p72 = scmp.ne.s32.totalorder %s64, %s66
    %p73 = scmp.eq.s32.totalorder %s14, 3
    %p74 = por %p72, %p73
    %p75 = scmp.ne.s32.totalorder %s66, %s67
    %p76 = scmp.eq.s32.totalorder %s14, 0
    %p77 = por %p75, %p76
    %p78 = scmp.ne.s32.totalorder %s66, %s67
    %p79 = scmp.eq.s32.totalorder %s15, 3
    %p80 = por %p78, %p79
    %p82 = scmp.ne.s32.totalorder %s67, %s81
    %p83 = scmp.eq.s32.totalorder %s15, 0
    %p84 = por %p82, %p83
    %s85 = ssub.s32 %s9, %s16
    %p86 = scmp.eq.s32.totalorder %s85, 0
    %s88 = sadd.s32 %s87, 1
    %s89 = scalar_select %p86, %s87, %s88
    %p92 = pneg %p86
    %p93 = scmp.eq.s32.totalorder %s9, 3
    %p94 = por %p92, %p93
    %p95 = scmp.ne.s32.totalorder %s87, %s90
    %p96 = scmp.eq.s32.totalorder %s9, 0
    %p97 = por %p95, %p96
    %p98 = scmp.ne.s32.totalorder %s87, %s90
    %p99 = scmp.eq.s32.totalorder %s14, 3
    %p100 = por %p98, %p99
    %p101 = scmp.ne.s32.totalorder %s90, %s91
    %p102 = scmp.eq.s32.totalorder %s14, 0
    %p103 = por %p101, %p102
    %p104 = scmp.ne.s32.totalorder %s90, %s91
    %p105 = scmp.eq.s32.totalorder %s15, 3
    %p106 = por %p104, %p105
    %p108 = scmp.ne.s32.totalorder %s91, %s107
    %p109 = scmp.eq.s32.totalorder %s15, 0
    %p110 = por %p108, %p109
    %p111 = scmp.le.s32.totalorder 1, %s9
    %p112 = scmp.lt.s32.totalorder %s9, 5
    %p113 = pnand %p111, %p112
    %p114 = pneg %p113
    // Predicated region
    $region9: #{synapse_conv_bptt_forward.1} parent=5 // pred_check
      _
    $region10: #{synapse_conv_bptt_forward.1} parent=5 // pred_check_branch
      %116 = sbr.rel (%p113) target = $region12
    $region11: #{synapse_conv_bptt_forward.1} parent=5 // pred_region
      %s117 = ssub.s32 %s9, 1
      // Predicated region
      $region13: #{synapse_conv_bptt_forward.1} parent=11 // pred_check
        %p118 = pneg %p56
      $region14: #{synapse_conv_bptt_forward.1} parent=11 // pred_check_branch
        %120 = sbr.rel (%p118) target = $region16
      $region15: #{synapse_conv_bptt_forward.1} parent=11 // pred_region
        _
      $region16: #{synapse_conv_bptt_forward.1} parent=11 // pred_fallthru
        _
      // Predicated region
      $region17: #{synapse_conv_bptt_forward.1} parent=11 // pred_check
        %p121 = pneg %p77
      $region18: #{synapse_conv_bptt_forward.1} parent=11 // pred_check_branch
        %123 = sbr.rel (%p121) target = $region20
      $region19: #{synapse_conv_bptt_forward.1} parent=11 // pred_region
        _
      $region20: #{synapse_conv_bptt_forward.1} parent=11 // pred_fallthru
        _
    $region12: #{synapse_conv_bptt_forward.1} parent=5 // pred_fallthru
      _
    %p124 = scmp.lt.s32.totalorder %s9, 4
    // Predicated region
    $region21: #{synapse_conv_bptt_forward.1} parent=5 // pred_check
      %p125 = pneg %p124
    $region22: #{synapse_conv_bptt_forward.1} parent=5 // pred_check_branch
      %127 = sbr.rel (%p125) target = $region24
    $region23: #{synapse_conv_bptt_forward.1} parent=5 // pred_region
      // Predicated region
      $region25: #{synapse_conv_bptt_forward.1} parent=23 // pred_check
        %p128 = pneg %p29
      $region26: #{synapse_conv_bptt_forward.1} parent=23 // pred_check_branch
        %130 = sbr.rel (%p128) target = $region28
      $region27: #{synapse_conv_bptt_forward.1} parent=23 // pred_region
        %s131 = smul.u32 4, %s9
        %p132 = scmp.lt.s32.totalorder %s131, 15
        %s133 = scalar_select %p132, %s131, 15
        %s134 = smul.addr %s133, 3
        %s135 = smul.addr %s134, 4
        %s136 = scalar_lea.vmem %s0, %s135
        %s137 = smul.u32 4, %s9
      $region28: #{synapse_conv_bptt_forward.1} parent=23 // pred_fallthru
        _
    $region24: #{synapse_conv_bptt_forward.1} parent=5 // pred_fallthru
      _
    %p138 = scmp.le.s32.totalorder 1, %s9
    %p139 = scmp.lt.s32.totalorder %s9, 5
    %p140 = pnand %p138, %p139
    %p141 = pneg %p140
    // Predicated region
    $region29: #{synapse_conv_bptt_forward.1} parent=5 // pred_check
      _
    $region30: #{synapse_conv_bptt_forward.1} parent=5 // pred_check_branch
      %143 = sbr.rel (%p140) target = $region32
    $region31: #{synapse_conv_bptt_forward.1} parent=5 // pred_region
      %s144 = ssub.s32 %s9, 1
      %s145 = smul.u32 4, %s14
      %p146 = scmp.lt.s32.totalorder %s145, 15
      %s147 = scalar_select %p146, %s145, 15
      %s148 = smul.addr %s147, 3
      %s149 = smul.addr %s148, 4
      %s150 = scalar_lea.vmem %s0, %s149
      %p151 = pneg %p35
      %p152 = pneg %p32
      %p153 = pneg %p56
      %p154 = pneg %p53
      %p155 = pneg %p77
      %p156 = pneg %p74
      %p157 = pneg %p103
      %p158 = pneg %p100
      %s159 = smul.u32 4, %s14
      %p160 = scmp.lt.s32.totalorder %s159, 15
      %s161 = scalar_select %p160, %s159, 15
      %s162 = smul.addr %s161, 2
      %s163 = smul.addr %s162, 8
      %s164 = scalar_lea.vmem %s3, %s163
      %s165 = smul.u32 4, %s14
      %p166 = scmp.lt.s32.totalorder %s165, 15
      %s167 = scalar_select %p166, %s165, 15
      %s168 = smul.addr %s167, 3
      %s169 = smul.addr %s168, 4
      %s170 = scalar_lea.vmem %s0, %s169
      %s171 = smul.u32 4, %s14
      %s172 = smul.u32 4, %s14
      %p173 = scmp.lt.s32.totalorder %s172, 15
      %s174 = scalar_select %p173, %s172, 15
      %s175 = smul.addr %s174, 2
      %s176 = smul.addr %s175, 8
      %s177 = scalar_lea.vmem %s3, %s176
      %s178 = smul.u32 4, %s14
      %v180 = vld [vmem:[%s170] sm:$0xf]
      %v181 = vld [vmem:[%s170 + $0x4] sm:$0xf]
      %v182 = vld [vmem:[%s170 + $0xc] sm:$0xf]
      %v183 = vld [vmem:[%s170 + $0x10] sm:$0xf]
      %v184 = vld [vmem:[%s170 + $0x18] sm:$0xf]
      %v185 = vld [vmem:[%s170 + $0x1c] sm:$0xf]
      %v186 = vld [vmem:[%s170 + $0x24] sm:$0xf]
      %v187 = vld [vmem:[%s170 + $0x28] sm:$0xf]
      %v188 = vld [vmem:[%s1] sm:$0xf]
      %v189 = vld [vmem:[%s1 + $0x4] sm:$0xf]
      %v190 = vld [vmem:[%s1 + $0x8] sm:$0xf]
      %v191 = vld [vmem:[%s1 + $0xc] sm:$0xf]
      %v192 = vld [vmem:[%s1 + $0x10] sm:$0xf]
      %v193 = vld [vmem:[%s1 + $0x14] sm:$0xf]
      %v194 = vld [vmem:[%s1 + $0x18] sm:$0xf]
      %v195 = vld [vmem:[%s1 + $0x1c] sm:$0xf]
      %v196 = vld [vmem:[%s1 + $0x20] sm:$0xf]
      %v197 = vld [vmem:[%s170 + $0x8] sm:$0x1]
      %v198 = vld [vmem:[%s170 + $0x14] sm:$0x1]
      %v199 = vld [vmem:[%s170 + $0x20] sm:$0x1]
      %v200 = vld [vmem:[%s170 + $0x2c] sm:$0x1]
      %vm201 = vsmask.f32 3328
      %vm202 = vsmask.f32 7440
      %vm203 = vmor %vm201, %vm202
      %v205 = vshrl.u32 %v180, 16
      %v207 = vrot.slane %v205, 4
      %v208 = vshll.u32 %v180, 16
      %v210 = vrot.slane %v208, 5
      %v211 = vor.u32 %v207, %v210
      %v212 = vrot.slane %v211, 4
      %v214 = vshll.u32 %v181, 16
      %v216 = vrot.slane %v214, 5
      %v217 = vsel %vm203, %v212, %v216
      %v218 = vshrl.u32 %v181, 16
      %v220 = vrot.slane %v218, 4
      %v221 = vor.u32 %v220, %v216
      %v222 = vrot.slane %v221, 4
      %v224 = vshll.u32 %v197, 16
      %v226 = vrot.slane %v224, 5
      %v227 = vsel %vm203, %v222, %v226
      %v229 = vshrl.u32 %v182, 16
      %v231 = vrot.slane %v229, 4
      %v232 = vshll.u32 %v182, 16
      %v234 = vrot.slane %v232, 5
      %v235 = vor.u32 %v231, %v234
      %v236 = vrot.slane %v235, 4
      %v238 = vshll.u32 %v183, 16
      %v240 = vrot.slane %v238, 5
      %v241 = vsel %vm203, %v236, %v240
      %v242 = vshrl.u32 %v183, 16
      %v244 = vrot.slane %v242, 4
      %v245 = vor.u32 %v244, %v240
      %v246 = vrot.slane %v245, 4
      %v248 = vshll.u32 %v198, 16
      %v250 = vrot.slane %v248, 5
      %v251 = vsel %vm203, %v246, %v250
      %v253 = vshrl.u32 %v184, 16
      %v255 = vrot.slane %v253, 4
      %v256 = vshll.u32 %v184, 16
      %v258 = vrot.slane %v256, 5
      %v259 = vor.u32 %v255, %v258
      %v260 = vrot.slane %v259, 4
      %v262 = vshll.u32 %v185, 16
      %v264 = vrot.slane %v262, 5
      %v265 = vsel %vm203, %v260, %v264
      %v266 = vshrl.u32 %v185, 16
      %v268 = vrot.slane %v266, 4
      %v269 = vor.u32 %v268, %v264
      %v270 = vrot.slane %v269, 4
      %v272 = vshll.u32 %v199, 16
      %v274 = vrot.slane %v272, 5
      %v275 = vsel %vm203, %v270, %v274
      %v277 = vshrl.u32 %v186, 16
      %v279 = vrot.slane %v277, 4
      %v280 = vshll.u32 %v186, 16
      %v282 = vrot.slane %v280, 5
      %v283 = vor.u32 %v279, %v282
      %v284 = vrot.slane %v283, 4
      %v286 = vshll.u32 %v187, 16
      %v288 = vrot.slane %v286, 5
      %v289 = vsel %vm203, %v284, %v288
      %v290 = vshrl.u32 %v187, 16
      %v292 = vrot.slane %v290, 4
      %v293 = vor.u32 %v292, %v288
      %v294 = vrot.slane %v293, 4
      %v296 = vshll.u32 %v200, 16
      %v298 = vrot.slane %v296, 5
      %v299 = vsel %vm203, %v294, %v298
      %s300 = scalar_lea.vmem %s1, 36
      %v301 = vld [vmem:[%s300] sm:$0xf]
      %v302 = vld [vmem:[%s300 + $0x4] sm:$0xf]
      %v303 = vld [vmem:[%s300 + $0x8] sm:$0xf]
      %v304 = vld [vmem:[%s300 + $0xc] sm:$0xf]
      %v305 = vld [vmem:[%s300 + $0x10] sm:$0xf]
      %v306 = vld [vmem:[%s300 + $0x14] sm:$0xf]
      %v307 = vld [vmem:[%s300 + $0x18] sm:$0xf]
      %v308 = vld [vmem:[%s300 + $0x1c] sm:$0xf]
      %v309 = vld [vmem:[%s300 + $0x20] sm:$0xf]
      %v310 = vunpack.c.l.b16 %v217
      %v311 = vunpack.c.l.b16 %v227
      %v312 = vunpack.c.l.b16 %v241
      %v313 = vunpack.c.l.b16 %v251
      %v314 = vunpack.c.l.b16 %v265
      %v315 = vunpack.c.l.b16 %v275
      %v316 = vunpack.c.l.b16 %v289
      %v317 = vunpack.c.l.b16 %v299
      %v318 = vpack.c.b16 %v311, %v310
      %v319 = vpack.c.b16 %v313, %v312
      %v320 = vpack.c.b16 %v315, %v314
      %v321 = vpack.c.b16 %v317, %v316
      %v331 = vunpack.c.l.b16 %v301
      %v332 = vunpack.c.l.b16 %v302
      %v333 = vunpack.c.l.b16 %v303
      %v334 = vunpack.c.l.b16 %v304
      %v335 = vunpack.c.l.b16 %v305
      %v336 = vunpack.c.l.b16 %v306
      %v337 = vunpack.c.l.b16 %v307
      %v338 = vunpack.c.l.b16 %v308
      %v339 = vunpack.c.l.b16 %v309
      %v340 = vpack.c.b16 %v332, %v331
      %v341 = vpack.c.b16 %v334, %v333
      %v342 = vpack.c.b16 %v336, %v335
      %v343 = vpack.c.b16 %v338, %v337
      %v344 = vpack.c.b16 %v339, %v339
      %vm349 = vcmask 588800
      %v351 = vsel %vm349, %v318, 0
      %v354 = vsel %vm349, %v319, 0
      %v357 = vsel %vm349, %v320, 0
      %v360 = vsel %vm349, %v321, 0
      %vm362 = vcmask 1043456
      %v364 = vsel %vm362, %v344, 0
      %366 = vmatpush.bf16.msra.mxu0 0
      %367 = vmatpush.bf16.msra.mxu0 0
      %368 = vmatpush.bf16.msra.mxu0 0
      %369 = vmatpush.bf16.msra.mxu0 %v364
      %370 = vmatpush.bf16.msra.mxu0 %v343
      %371 = vmatpush.bf16.msra.mxu0 %v342
      %372 = vmatpush.bf16.msra.mxu0 %v341
      %373 = vmatpush.bf16.msra.mxu0 %v340
      %374 = vmatmul.bf16.gmra.mxu0 %v351
      %v375 = vpop.f32.mrf.mxu0
      %v376 = vadd.f32 0.0, %v375
      %v377 = vpop.f32.mrf.mxu0
      %v378 = vadd.f32 0.0, %v377
      %379 = vmatmul.bf16.gmra.mxu0 %v354
      %v380 = vpop.f32.mrf.mxu0
      %v381 = vadd.f32 0.0, %v380
      %v382 = vpop.f32.mrf.mxu0
      %v383 = vadd.f32 0.0, %v382
      %384 = vmatmul.bf16.gmra.mxu0 %v357
      %v385 = vpop.f32.mrf.mxu0
      %v386 = vadd.f32 0.0, %v385
      %v387 = vpop.f32.mrf.mxu0
      %v388 = vadd.f32 0.0, %v387
      %389 = vmatmul.bf16.gmra.mxu0 %v360
      %v390 = vpop.f32.mrf.mxu0
      %v391 = vadd.f32 0.0, %v390
      %v392 = vpop.f32.mrf.mxu0
      %v393 = vadd.f32 0.0, %v392
      %394 = vdwg.mxu0
      %v403 = vunpack.c.l.b16 %v180
      %v404 = vunpack.c.l.b16 %v181
      %v405 = vunpack.c.l.b16 %v182
      %v406 = vunpack.c.l.b16 %v183
      %v407 = vunpack.c.l.b16 %v184
      %v408 = vunpack.c.l.b16 %v185
      %v409 = vunpack.c.l.b16 %v186
      %v410 = vunpack.c.l.b16 %v187
      %v411 = vpack.c.b16 %v404, %v403
      %v412 = vpack.c.b16 %v406, %v405
      %v413 = vpack.c.b16 %v408, %v407
      %v414 = vpack.c.b16 %v410, %v409
      %v424 = vunpack.c.l.b16 %v188
      %v425 = vunpack.c.l.b16 %v189
      %v426 = vunpack.c.l.b16 %v190
      %v427 = vunpack.c.l.b16 %v191
      %v428 = vunpack.c.l.b16 %v192
      %v429 = vunpack.c.l.b16 %v193
      %v430 = vunpack.c.l.b16 %v194
      %v431 = vunpack.c.l.b16 %v195
      %v432 = vunpack.c.l.b16 %v196
      %v433 = vpack.c.b16 %v425, %v424
      %v434 = vpack.c.b16 %v427, %v426
      %v435 = vpack.c.b16 %v429, %v428
      %v436 = vpack.c.b16 %v431, %v430
      %v437 = vpack.c.b16 %v432, %v432
      %v443 = vsel %vm349, %v411, 0
      %v446 = vsel %vm349, %v412, 0
      %v449 = vsel %vm349, %v413, 0
      %v452 = vsel %vm349, %v414, 0
      %v455 = vsel %vm362, %v437, 0
      %457 = vmatpush.bf16.msra.mxu0 0
      %458 = vmatpush.bf16.msra.mxu0 0
      %459 = vmatpush.bf16.msra.mxu0 0
      %460 = vmatpush.bf16.msra.mxu0 %v455
      %461 = vmatpush.bf16.msra.mxu0 %v436
      %462 = vmatpush.bf16.msra.mxu0 %v435
      %463 = vmatpush.bf16.msra.mxu0 %v434
      %464 = vmatpush.bf16.msra.mxu0 %v433
      %465 = vmatmul.bf16.gmra.mxu0 %v443
      %v466 = vpop.f32.mrf.mxu0
      %v467 = vadd.f32 %v376, %v466
      %v468 = vpop.f32.mrf.mxu0
      %v469 = vadd.f32 %v378, %v468
      %470 = vmatmul.bf16.gmra.mxu0 %v446
      %v471 = vpop.f32.mrf.mxu0
      %v472 = vadd.f32 %v381, %v471
      %v473 = vpop.f32.mrf.mxu0
      %v474 = vadd.f32 %v383, %v473
      %475 = vmatmul.bf16.gmra.mxu0 %v449
      %v476 = vpop.f32.mrf.mxu0
      %v477 = vadd.f32 %v386, %v476
      %v478 = vpop.f32.mrf.mxu0
      %v479 = vadd.f32 %v388, %v478
      %480 = vmatmul.bf16.gmra.mxu0 %v452
      %v481 = vpop.f32.mrf.mxu0
      %v482 = vadd.f32 %v391, %v481
      %v483 = vpop.f32.mrf.mxu0
      %v484 = vadd.f32 %v393, %v483
      %485 = vdwg.mxu0
      %v486 = vld [vmem:[%s170] sm:$0xe]
      %v487 = vld [vmem:[%s170 + $0xc] sm:$0xe]
      %v488 = vld [vmem:[%s170 + $0x18] sm:$0xe]
      %v489 = vld [vmem:[%s170 + $0x24] sm:$0xe]
      %vm498 = vcmask 1042432
      %vm499 = vcmask 1046532
      %vm500 = vmor %vm498, %vm499
      %v501 = vrot.slane %v486, 5
      %v502 = vrot.slane %v501, 4
      %v503 = vrot.slane %v181, 5
      %v504 = vsel %vm500, %v502, %v503
      %v505 = vrot.slane %v503, 4
      %v506 = vrot.slane %v197, 5
      %v507 = vsel %vm500, %v505, %v506
      %v508 = vrot.slane %v487, 5
      %v509 = vrot.slane %v508, 4
      %v510 = vrot.slane %v183, 5
      %v511 = vsel %vm500, %v509, %v510
      %v512 = vrot.slane %v510, 4
      %v513 = vrot.slane %v198, 5
      %v514 = vsel %vm500, %v512, %v513
      %v515 = vrot.slane %v488, 5
      %v516 = vrot.slane %v515, 4
      %v517 = vrot.slane %v185, 5
      %v518 = vsel %vm500, %v516, %v517
      %v519 = vrot.slane %v517, 4
      %v520 = vrot.slane %v199, 5
      %v521 = vsel %vm500, %v519, %v520
      %v522 = vrot.slane %v489, 5
      %v523 = vrot.slane %v522, 4
      %v524 = vrot.slane %v187, 5
      %v525 = vsel %vm500, %v523, %v524
      %v526 = vrot.slane %v524, 4
      %v527 = vrot.slane %v200, 5
      %v528 = vsel %vm500, %v526, %v527
      %s529 = scalar_lea.vmem %s1, 72
      %v530 = vld [vmem:[%s529] sm:$0xf]
      %v531 = vld [vmem:[%s529 + $0x4] sm:$0xf]
      %v532 = vld [vmem:[%s529 + $0x8] sm:$0xf]
      %v533 = vld [vmem:[%s529 + $0xc] sm:$0xf]
      %v534 = vld [vmem:[%s529 + $0x10] sm:$0xf]
      %v535 = vld [vmem:[%s529 + $0x14] sm:$0xf]
      %v536 = vld [vmem:[%s529 + $0x18] sm:$0xf]
      %v537 = vld [vmem:[%s529 + $0x1c] sm:$0xf]
      %v538 = vld [vmem:[%s529 + $0x20] sm:$0xf]
      %v539 = vunpack.c.l.b16 %v504
      %v540 = vunpack.c.l.b16 %v507
      %v541 = vunpack.c.l.b16 %v511
      %v542 = vunpack.c.l.b16 %v514
      %v543 = vunpack.c.l.b16 %v518
      %v544 = vunpack.c.l.b16 %v521
      %v545 = vunpack.c.l.b16 %v525
      %v546 = vunpack.c.l.b16 %v528
      %v547 = vpack.c.b16 %v540, %v539
      %v548 = vpack.c.b16 %v542, %v541
      %v549 = vpack.c.b16 %v544, %v543
      %v550 = vpack.c.b16 %v546, %v545
      %v560 = vunpack.c.l.b16 %v530
      %v561 = vunpack.c.l.b16 %v531
      %v562 = vunpack.c.l.b16 %v532
      %v563 = vunpack.c.l.b16 %v533
      %v564 = vunpack.c.l.b16 %v534
      %v565 = vunpack.c.l.b16 %v535
      %v566 = vunpack.c.l.b16 %v536
      %v567 = vunpack.c.l.b16 %v537
      %v568 = vunpack.c.l.b16 %v538
      %v569 = vpack.c.b16 %v561, %v560
      %v570 = vpack.c.b16 %v563, %v562
      %v571 = vpack.c.b16 %v565, %v564
      %v572 = vpack.c.b16 %v567, %v566
      %v573 = vpack.c.b16 %v568, %v568
      %v579 = vsel %vm349, %v547, 0
      %v582 = vsel %vm349, %v548, 0
      %v585 = vsel %vm349, %v549, 0
      %v588 = vsel %vm349, %v550, 0
      %v591 = vsel %vm362, %v573, 0
      %593 = vmatpush.bf16.msra.mxu0 0
      %594 = vmatpush.bf16.msra.mxu0 0
      %595 = vmatpush.bf16.msra.mxu0 0
      %596 = vmatpush.bf16.msra.mxu0 %v591
      %597 = vmatpush.bf16.msra.mxu0 %v572
      %598 = vmatpush.bf16.msra.mxu0 %v571
      %599 = vmatpush.bf16.msra.mxu0 %v570
      %600 = vmatpush.bf16.msra.mxu0 %v569
      %601 = vmatmul.bf16.gmra.mxu0 %v579
      %v602 = vpop.f32.mrf.mxu0
      %v603 = vadd.f32 0.0, %v602
      %v604 = vpop.f32.mrf.mxu0
      %v605 = vadd.f32 0.0, %v604
      %606 = vmatmul.bf16.gmra.mxu0 %v582
      %v607 = vpop.f32.mrf.mxu0
      %v608 = vadd.f32 0.0, %v607
      %v609 = vpop.f32.mrf.mxu0
      %v610 = vadd.f32 0.0, %v609
      %611 = vmatmul.bf16.gmra.mxu0 %v585
      %v612 = vpop.f32.mrf.mxu0
      %v613 = vadd.f32 0.0, %v612
      %v614 = vpop.f32.mrf.mxu0
      %v615 = vadd.f32 0.0, %v614
      %616 = vmatmul.bf16.gmra.mxu0 %v588
      %v617 = vpop.f32.mrf.mxu0
      %v618 = vadd.f32 0.0, %v617
      %v619 = vpop.f32.mrf.mxu0
      %v620 = vadd.f32 0.0, %v619
      %621 = vdwg.mxu0
      %v622 = vadd.f32 %v467, %v603
      %v623 = vadd.f32 %v469, %v605
      %v624 = vadd.f32 %v472, %v608
      %v625 = vadd.f32 %v474, %v610
      %v626 = vadd.f32 %v477, %v613
      %v627 = vadd.f32 %v479, %v615
      %v628 = vadd.f32 %v482, %v618
      %v629 = vadd.f32 %v484, %v620
      %v630 = vld [vmem:[%s2] sm:$0x1]
      %v632 = vperm.slane %v630, 0
      %v634 = vadd.f32 %v622, %v632
      %v635 = vadd.f32 %v623, %v632
      %v636 = vadd.f32 %v624, %v632
      %v637 = vadd.f32 %v625, %v632
      %v638 = vadd.f32 %v626, %v632
      %v639 = vadd.f32 %v627, %v632
      %v640 = vadd.f32 %v628, %v632
      %v641 = vadd.f32 %v629, %v632
      %642 = vst [vmem:[%s177] sm:$0xff] %v634
      %643 = vst [vmem:[%s177 + $0x8] sm:$0xff] %v635
      %644 = vst [vmem:[%s177 + $0x10] sm:$0xff] %v636
      %645 = vst [vmem:[%s177 + $0x18] sm:$0xff] %v637
      %646 = vst [vmem:[%s177 + $0x20] sm:$0xff] %v638
      %647 = vst [vmem:[%s177 + $0x28] sm:$0xff] %v639
      %648 = vst [vmem:[%s177 + $0x30] sm:$0xff] %v640
      %649 = vst [vmem:[%s177 + $0x38] sm:$0xff] %v641
      %s650 = smul.u32 4, %s14
      %p651 = scmp.lt.s32.totalorder %s650, 15
      %s652 = scalar_select %p651, %s650, 15
      %s653 = smul.addr %s652, 2
      %s654 = smul.addr %s653, 8
      %s655 = scalar_lea.vmem %s3, %s654
      // Predicated region
      $region33: #{synapse_conv_bptt_forward.1} parent=31 // pred_check
        %p656 = pneg %p100
      $region34: #{synapse_conv_bptt_forward.1} parent=31 // pred_check_branch
        %658 = sbr.rel (%p656) target = $region36
      $region35: #{synapse_conv_bptt_forward.1} parent=31 // pred_region
        %s659 = smul.u32 4, %s14
      $region36: #{synapse_conv_bptt_forward.1} parent=31 // pred_fallthru
        _
    $region32: #{synapse_conv_bptt_forward.1} parent=5 // pred_fallthru
      _
    %p660 = scmp.le.s32.totalorder 2, %s9
    // Predicated region
    $region37: #{synapse_conv_bptt_forward.1} parent=5 // pred_check
      %p661 = pneg %p660
    $region38: #{synapse_conv_bptt_forward.1} parent=5 // pred_check_branch
      %663 = sbr.rel (%p661) target = $region40
    $region39: #{synapse_conv_bptt_forward.1} parent=5 // pred_region
      %s664 = ssub.s32 %s9, 2
      // Predicated region
      $region41: #{synapse_conv_bptt_forward.1} parent=39 // pred_check
        %p665 = pneg %p106
      $region42: #{synapse_conv_bptt_forward.1} parent=39 // pred_check_branch
        %667 = sbr.rel (%p665) target = $region44
      $region43: #{synapse_conv_bptt_forward.1} parent=39 // pred_region
        %s668 = smul.u32 4, %s15
        %p669 = scmp.lt.s32.totalorder %s668, 15
        %s670 = scalar_select %p669, %s668, 15
        %s671 = smul.addr %s670, 2
        %s672 = smul.addr %s671, 8
        %s673 = scalar_lea.vmem %s3, %s672
      $region44: #{synapse_conv_bptt_forward.1} parent=39 // pred_fallthru
        _
    $region40: #{synapse_conv_bptt_forward.1} parent=5 // pred_fallthru
      _
  $region6: #{synapse_conv_bptt_forward.1} parent=0 // loop_footer
    %s13 = sadd.s32 1, %s9
  $region7: #{synapse_conv_bptt_forward.1} parent=0 // loop_footer_branch
    %8 = sbr.rel target = $region3
  $region8: #{synapse_conv_bptt_forward.1} parent=0 // loop_exit
    _

</llo_original>
